<compile_context>
chip_gen: v5e
topology: v5e:2x2
jax: 0.10.0
libtpu: 0.0.40
codegen_flags: <defaults>
</compile_context>

<pallas_src>
import jax
import jax.numpy as jnp
from jax.experimental import pallas as pl
from jax.experimental.pallas import tpu as pltpu

BN_EPS = 1e-5


def _value_net_kernel(x_ref, w1_ref, b1_ref, w2_ref, b2_ref, w3_ref, b3_ref,
                      out_ref):
    """Fused MLP forward for one batch tile (BN pre-folded into w/b)."""
    x = x_ref[...]

    # ---- layer 1: Linear(+folded BN) -> ReLU (Dropout == identity) ----
    h = jnp.dot(x, w1_ref[...], preferred_element_type=jnp.float32) + b1_ref[...]
    h = jnp.maximum(h, 0.0)

    # ---- layer 2: Linear(+folded BN) -> ReLU (Dropout == identity) ----
    h = jnp.dot(h, w2_ref[...], preferred_element_type=jnp.float32) + b2_ref[...]
    h = jnp.maximum(h, 0.0)

    # ---- output layer (N=1): VPU multiply + lane reduction, no MXU ----
    v = jnp.sum(h * w3_ref[...], axis=-1, keepdims=True) + b3_ref[0]   # (TB, 1)

    # Lane-dense store: broadcast across the 128-lane output block; the wrapper
    # slices column 0.  Avoids masked partial stores (vst.msk).
    out_ref[...] = jnp.broadcast_to(v, out_ref.shape).astype(out_ref.dtype)


def _round_up(x, m):
    return (x + m - 1) // m * m


def value_network_forward(x, params, *, block_b=256):
    """x: [B, input_size] f32.  params: flat tuple (see init_value_network_params)."""
    (w1, b1, g1, be1, rm1, rv1,
     w2, b2, g2, be2, rm2, rv2,
     w3, b3) = params

    # ---- fold BatchNorm (inference-mode running stats) into the Linears ----
    s1 = g1 * jax.lax.rsqrt(rv1 + BN_EPS)            # (1, h1)
    w1f = w1 * s1
    b1f = (b1 - rm1) * s1 + be1
    s2 = g2 * jax.lax.rsqrt(rv2 + BN_EPS)            # (1, h2)
    w2f = w2 * s2
    b2f = (b2 - rm2) * s2 + be2
    w3r = jnp.reshape(w3, (1, -1)).astype(jnp.float32)   # (1, h2) row for VPU reduce
    b3s = jnp.reshape(b3, (1,)).astype(jnp.float32)      # SMEM scalar

    B, D = x.shape
    H1 = w1f.shape[1]
    H2 = w2f.shape[1]
    OUT_LANES = 128                                  # lane-dense output width

    # Batch tile: multiple of 8 sublanes; 256 rows for large B (fills the
    # 256-row MXU on v6e/v7x) while staying tiny in VMEM.
    TB = min(block_b, _round_up(B, 8))
    Bp = _round_up(B, TB)
    if Bp != B:
        x = jnp.pad(x, ((0, Bp - B), (0, 0)))
    nsteps = Bp // TB

    flops = 2 * Bp * (D * H1 + H1 * H2 + H2)
    bytes_accessed = 4 * (Bp * D + int(w1f.size) + int(b1f.size) + int(w2f.size)
                          + int(b2f.size) + int(w3r.size) + int(b3s.size)
                          + Bp * OUT_LANES)

    out_padded = pl.pallas_call(
        _value_net_kernel,
        out_shape=jax.ShapeDtypeStruct((Bp, OUT_LANES), jnp.float32),
        grid=(nsteps,),
        in_specs=[
            pl.BlockSpec((TB, D), lambda i: (i, 0)),            # x (batch-tiled)
            pl.BlockSpec((D, H1), lambda i: (0, 0)),            # w1 (VMEM-resident)
            pl.BlockSpec((1, H1), lambda i: (0, 0)),            # b1
            pl.BlockSpec((H1, H2), lambda i: (0, 0)),           # w2
            pl.BlockSpec((1, H2), lambda i: (0, 0)),            # b2
            pl.BlockSpec((1, H2), lambda i: (0, 0)),            # w3 row
            pl.BlockSpec(memory_space=pltpu.MemorySpace.SMEM),  # b3 scalar
        ],
        out_specs=pl.BlockSpec((TB, OUT_LANES), lambda i: (i, 0)),
        compiler_params=pltpu.CompilerParams(
            dimension_semantics=("parallel",),
            vmem_limit_bytes=32 * 1024 * 1024),
        cost_estimate=pl.CostEstimate(flops=flops, transcendentals=0,
                                      bytes_accessed=bytes_accessed),
    )(x, w1f, b1f, w2f, b2f, w3r, b3s)

    return out_padded[:B, :1]


def init_value_network_params(key, input_size, hidden_sizes=(128, 64),
                              output_size=1):
    """Deterministic synthetic parameters mirroring the PyTorch module shapes.

    BN params are perturbed from their defaults so the BN-folding path is
    actually exercised by the correctness check.
    """
    keys = jax.random.split(key, 14)
    h1, h2 = hidden_sizes

    def lin(kw, kb, fan_in, fan_out):
        bound = 1.0 / jnp.sqrt(float(fan_in))
        w = jax.random.uniform(kw, (fan_in, fan_out), jnp.float32, -bound, bound)
        b = jax.random.uniform(kb, (1, fan_out), jnp.float32, -bound, bound)
        return w, b

    w1, b1 = lin(keys[0], keys[1], input_size, h1)
    w2, b2 = lin(keys[2], keys[3], h1, h2)
    w3, b3 = lin(keys[4], keys[5], h2, output_size)

    def bn(kg, kb, km, kv, n):
        g = 1.0 + 0.1 * jax.random.normal(kg, (1, n), jnp.float32)
        be = 0.1 * jax.random.normal(kb, (1, n), jnp.float32)
        rm = 0.1 * jax.random.normal(km, (1, n), jnp.float32)
        rv = 1.0 + 0.1 * jax.random.uniform(kv, (1, n), jnp.float32)
        return g, be, rm, rv

    g1, be1, rm1, rv1 = bn(keys[6], keys[7], keys[8], keys[9], h1)
    g2, be2, rm2, rv2 = bn(keys[10], keys[11], keys[12], keys[13], h2)

    return (w1, b1, g1, be1, rm1, rv1,
            w2, b2, g2, be2, rm2, rv2,
            w3, b3)


def value_network_reference(x, params):
    """Plain-JAX reference (explicit BN, no folding) for sanity checking."""
    (w1, b1, g1, be1, rm1, rv1,
     w2, b2, g2, be2, rm2, rv2,
     w3, b3) = params
    h = x @ w1 + b1
    h = (h - rm1) / jnp.sqrt(rv1 + BN_EPS) * g1 + be1
    h = jnp.maximum(h, 0.0)
    h = h @ w2 + b2
    h = (h - rm2) / jnp.sqrt(rv2 + BN_EPS) * g2 + be2
    h = jnp.maximum(h, 0.0)
    return h @ w3 + b3


if __name__ == "__main__":
    key = jax.random.PRNGKey(0)
    k_x, k_p = jax.random.split(key)

    batch = 8
    input_size = 10

    x = jax.random.normal(k_x, (batch, input_size), dtype=jnp.float32)
    params = init_value_network_params(k_p, input_size,
                                       hidden_sizes=(128, 64), output_size=1)

    out = value_network_forward(x, params)
    out = jax.block_until_ready(out)

    ref = value_network_reference(x, params)
    assert out.shape == (batch, 1), f"unexpected output shape {out.shape}"
    assert jnp.allclose(out, ref, atol=1e-4, rtol=1e-4), "mismatch vs reference"

    print("KERNEL_OK")
</pallas_src>

<mosaic_0001>
module attributes {stable_mosaic.version = 11 : i64} {
  func.func @_value_net_kernel(%arg0: i32, %arg1: memref<8x10xf32, #tpu.memory_space<vmem>>, %arg2: memref<10x128xf32, #tpu.memory_space<vmem>>, %arg3: memref<1x128xf32, #tpu.memory_space<vmem>>, %arg4: memref<128x64xf32, #tpu.memory_space<vmem>>, %arg5: memref<1x64xf32, #tpu.memory_space<vmem>>, %arg6: memref<1x64xf32, #tpu.memory_space<vmem>>, %arg7: memref<1xf32, #tpu.memory_space<smem>>, %arg8: memref<8x128xf32, #tpu.memory_space<vmem>>) attributes {dimension_semantics = [#tpu.dimension_semantics<parallel>], iteration_bounds = array<i64: 1>, scalar_prefetch = 0 : i64, scratch_operands = 0 : i64, tpu.core_type = #tpu.core_type<tc>, window_params = [{transform_indices = @transform_0, window_bounds = array<i64: 8, 10>}, {pipeline_mode = #tpu.pipeline_mode<synchronous>, transform_indices = @transform_1, window_bounds = array<i64: 10, 128>}, {pipeline_mode = #tpu.pipeline_mode<synchronous>, transform_indices = @transform_2, window_bounds = array<i64: 1, 128>}, {pipeline_mode = #tpu.pipeline_mode<synchronous>, transform_indices = @transform_3, window_bounds = array<i64: 128, 64>}, {pipeline_mode = #tpu.pipeline_mode<synchronous>, transform_indices = @transform_4, window_bounds = array<i64: 1, 64>}, {pipeline_mode = #tpu.pipeline_mode<synchronous>, transform_indices = @transform_5, window_bounds = array<i64: 1, 64>}, {transform_indices = @transform_6, window_bounds = array<i64: 1>}, {transform_indices = @transform_7, window_bounds = array<i64: 8, 128>}]} {
    %c0 = arith.constant 0 : index
    %c0_0 = arith.constant 0 : index
    %0 = vector.load %arg1[%c0, %c0_0] : memref<8x10xf32, #tpu.memory_space<vmem>>, vector<8x10xf32>
    %c0_1 = arith.constant 0 : index
    %c0_2 = arith.constant 0 : index
    %1 = vector.load %arg2[%c0_1, %c0_2] : memref<10x128xf32, #tpu.memory_space<vmem>>, vector<10x128xf32>
    %cst = arith.constant dense<0.000000e+00> : vector<8x128xf32>
    %2 = tpu.matmul %0, %1, %cst {dimension_numbers = #tpu.dot_dimension_numbers<[1], [0], [0], [1], [0, 0, 1, 1], [], []>} : vector<8x10xf32>, vector<10x128xf32>, vector<8x128xf32> -> vector<8x128xf32>
    %c0_3 = arith.constant 0 : index
    %c0_4 = arith.constant 0 : index
    %3 = vector.load %arg3[%c0_3, %c0_4] : memref<1x128xf32, #tpu.memory_space<vmem>>, vector<1x128xf32>
    %4 = vector.broadcast %3 : vector<1x128xf32> to vector<8x128xf32>
    %5 = arith.addf %2, %4 : vector<8x128xf32>
    %cst_5 = arith.constant 0.000000e+00 : f32
    %6 = vector.broadcast %cst_5 : f32 to vector<8x128xf32>
    %7 = arith.maximumf %5, %6 : vector<8x128xf32>
    %c0_6 = arith.constant 0 : index
    %c0_7 = arith.constant 0 : index
    %8 = vector.load %arg4[%c0_6, %c0_7] : memref<128x64xf32, #tpu.memory_space<vmem>>, vector<128x64xf32>
    %cst_8 = arith.constant dense<0.000000e+00> : vector<8x64xf32>
    %9 = tpu.matmul %7, %8, %cst_8 {dimension_numbers = #tpu.dot_dimension_numbers<[1], [0], [0], [1], [0, 0, 1, 1], [], []>} : vector<8x128xf32>, vector<128x64xf32>, vector<8x64xf32> -> vector<8x64xf32>
    %c0_9 = arith.constant 0 : index
    %c0_10 = arith.constant 0 : index
    %10 = vector.load %arg5[%c0_9, %c0_10] : memref<1x64xf32, #tpu.memory_space<vmem>>, vector<1x64xf32>
    %11 = vector.broadcast %10 : vector<1x64xf32> to vector<8x64xf32>
    %12 = arith.addf %9, %11 : vector<8x64xf32>
    %cst_11 = arith.constant 0.000000e+00 : f32
    %13 = vector.broadcast %cst_11 : f32 to vector<8x64xf32>
    %14 = arith.maximumf %12, %13 : vector<8x64xf32>
    %c0_12 = arith.constant 0 : index
    %c0_13 = arith.constant 0 : index
    %15 = vector.load %arg6[%c0_12, %c0_13] : memref<1x64xf32, #tpu.memory_space<vmem>>, vector<1x64xf32>
    %16 = vector.broadcast %15 : vector<1x64xf32> to vector<8x64xf32>
    %17 = arith.mulf %14, %16 : vector<8x64xf32>
    %cst_14 = arith.constant dense<0.000000e+00> : vector<8xf32>
    %18 = vector.multi_reduction <add>, %17, %cst_14 [1] : vector<8x64xf32> to vector<8xf32>
    %19 = vector.shape_cast %18 : vector<8xf32> to vector<8x1xf32>
    %c0_15 = arith.constant 0 : index
    %20 = memref.load %arg7[%c0_15] : memref<1xf32, #tpu.memory_space<smem>>
    %21 = vector.broadcast %20 : f32 to vector<8x1xf32>
    %22 = arith.addf %19, %21 : vector<8x1xf32>
    %23 = vector.shape_cast %22 : vector<8x1xf32> to vector<8x1xf32>
    %24 = vector.broadcast %23 : vector<8x1xf32> to vector<8x128xf32>
    %c0_16 = arith.constant 0 : index
    %c0_17 = arith.constant 0 : index
    %25 = vector.load %arg8[%c0_16, %c0_17] : memref<8x128xf32, #tpu.memory_space<vmem>>, vector<8x128xf32>
    tpu.vector_store %arg8[%c0_16, %c0_17], %24 {strides = array<i32>} : memref<8x128xf32, #tpu.memory_space<vmem>>, vector<8x128xf32>,
    return
  }
  func.func @transform_0(%arg0: i32) -> (i32, i32) {
    %c0_i32 = arith.constant 0 : i32
    %c0_i32_0 = arith.constant 0 : i32
    return %arg0, %c0_i32 : i32, i32
  }
  func.func @transform_1(%arg0: i32) -> (i32, i32) {
    %c0_i32 = arith.constant 0 : i32
    %c0_i32_0 = arith.constant 0 : i32
    %c0_i32_1 = arith.constant 0 : i32
    return %c0_i32, %c0_i32_0 : i32, i32
  }
  func.func @transform_2(%arg0: i32) -> (i32, i32) {
    %c0_i32 = arith.constant 0 : i32
    %c0_i32_0 = arith.constant 0 : i32
    %c0_i32_1 = arith.constant 0 : i32
    return %c0_i32, %c0_i32_0 : i32, i32
  }
  func.func @transform_3(%arg0: i32) -> (i32, i32) {
    %c0_i32 = arith.constant 0 : i32
    %c0_i32_0 = arith.constant 0 : i32
    %c0_i32_1 = arith.constant 0 : i32
    return %c0_i32, %c0_i32_0 : i32, i32
  }
  func.func @transform_4(%arg0: i32) -> (i32, i32) {
    %c0_i32 = arith.constant 0 : i32
    %c0_i32_0 = arith.constant 0 : i32
    %c0_i32_1 = arith.constant 0 : i32
    return %c0_i32, %c0_i32_0 : i32, i32
  }
  func.func @transform_5(%arg0: i32) -> (i32, i32) {
    %c0_i32 = arith.constant 0 : i32
    %c0_i32_0 = arith.constant 0 : i32
    %c0_i32_1 = arith.constant 0 : i32
    return %c0_i32, %c0_i32_0 : i32, i32
  }
  func.func @transform_6(%arg0: i32) -> i32 {
    %c0_i32 = arith.constant 0 : i32
    %c0_i32_0 = arith.constant 0 : i32
    return %c0_i32 : i32
  }
  func.func @transform_7(%arg0: i32) -> (i32, i32) {
    %c0_i32 = arith.constant 0 : i32
    %c0_i32_0 = arith.constant 0 : i32
    return %arg0, %c0_i32 : i32, i32
  }
}

</mosaic_0001>

<llo_original>
// kernel: tpu_custom_call.1
$region0: #{tpu_custom_call.1}
  #allocation0 [shape = 'u32[]', space=smem, size = 0x4, offset = 0x4, fixed_abs, tag = 'smem constant byte address 0x4 - core index']
  #allocation1 [shape = 'u32[72,128]{1,0:T(1,128)}', space=vmem, size = 0x9000, scoped, tag = 'internal scratch']
  #allocation2 [shape = 'f32[1]{0:T(128)S(6)}', space=smem, size = 0x200, scoped, tag = 'scoped memory for tpu_custom_call.1']
  %s0 = inlined_call_operand.vmem [shape: f32[8,10], index: 0, kind: input, shape index: {}]
  %s1 = inlined_call_operand.vmem [shape: f32[10,128], index: 1, kind: input, shape index: {}]
  %s2 = inlined_call_operand.vmem [shape: f32[1,128], index: 2, kind: input, shape index: {}]
  %s3 = inlined_call_operand.vmem [shape: f32[128,64], index: 3, kind: input, shape index: {}]
  %s4 = inlined_call_operand.vmem [shape: f32[1,64], index: 4, kind: input, shape index: {}]
  %s5 = inlined_call_operand.vmem [shape: f32[1,64], index: 5, kind: input, shape index: {}]
  %s6 = inlined_call_operand.<no memory space> [shape: f32[1], index: 6, kind: input, shape index: {}]
  %s7 = inlined_call_operand.hbm [shape: f32[8,128], index: 7, kind: output, shape index: {}]
  %s8 = sld [smem:[#allocation0]]
  $region38: #{tpu_custom_call.1} parent=0
    _
  %s10 = ssub.s32 1, %s8
  %s11 = scalar_select 0, %s10, %s8
  %12 = sst [smem:[#allocation2]] %s6
  $region1: #{tpu_custom_call.1} parent=0
    #allocation3 [shape = 'u8[4096]{0}', space=vmem, size = 0x1000, scoped, tag = 'output window, operand 0, single buffered']
    #allocation4 [shape = 's32[1]{0}', space=sflag, size = 0x4, scoped, tag = 'scoped memory for tpu_custom_call.1']
    %13 = vsyncpa [#allocation4], 0
    // Predicated region
    $region2: #{tpu_custom_call.1} parent=1 // pred_check
      _
    $region3: #{tpu_custom_call.1} parent=1 // pred_check_branch
      %15 = sbr.rel (0) target = $region5
    $region4: #{tpu_custom_call.1} parent=1 // pred_region
      _
    $region5: #{tpu_custom_call.1} parent=1 // pred_fallthru
      _
    // Predicated region
    $region6: #{tpu_custom_call.1} parent=1 // pred_check
      _
    $region7: #{tpu_custom_call.1} parent=1 // pred_check_branch
      %17 = sbr.rel (0) target = $region9
    $region8: #{tpu_custom_call.1} parent=1 // pred_region
      _
    $region9: #{tpu_custom_call.1} parent=1 // pred_fallthru
      _
    // Predicated region
    $region10: #{tpu_custom_call.1} parent=1 // pred_check
      _
    $region11: #{tpu_custom_call.1} parent=1 // pred_check_branch
      %19 = sbr.rel (0) target = $region13
    $region12: #{tpu_custom_call.1} parent=1 // pred_region
      _
    $region13: #{tpu_custom_call.1} parent=1 // pred_fallthru
      _
    // Predicated region
    $region14: #{tpu_custom_call.1} parent=1 // pred_check
      _
    $region15: #{tpu_custom_call.1} parent=1 // pred_check_branch
      %21 = sbr.rel (0) target = $region17
    $region16: #{tpu_custom_call.1} parent=1 // pred_region
      _
    $region17: #{tpu_custom_call.1} parent=1 // pred_fallthru
      _
    // Predicated region
    $region18: #{tpu_custom_call.1} parent=1 // pred_check
      _
    $region19: #{tpu_custom_call.1} parent=1 // pred_check_branch
      %23 = sbr.rel (0) target = $region21
    $region20: #{tpu_custom_call.1} parent=1 // pred_region
      _
    $region21: #{tpu_custom_call.1} parent=1 // pred_fallthru
      _
    // Predicated region
    $region22: #{tpu_custom_call.1} parent=1 // pred_check
      _
    $region23: #{tpu_custom_call.1} parent=1 // pred_check_branch
      %25 = sbr.rel (0) target = $region25
    $region24: #{tpu_custom_call.1} parent=1 // pred_region
      _
    $region25: #{tpu_custom_call.1} parent=1 // pred_fallthru
      _
    // Predicated region
    $region26: #{tpu_custom_call.1} parent=1 // pred_check
      _
    $region27: #{tpu_custom_call.1} parent=1 // pred_check_branch
      %27 = sbr.rel (0) target = $region29
    $region28: #{tpu_custom_call.1} parent=1 // pred_region
      _
    $region29: #{tpu_custom_call.1} parent=1 // pred_fallthru
      _
    %v28 = vld [vmem:[%s0] sm:$0xff]
    %v29 = vld [vmem:[%s1] sm:$0xff]
    %v30 = vld [vmem:[%s1 + $0x8] sm:$0x3]
    %v31 = vld [vmem:[%s2] sm:$0x1]
    %v33 = vperm.slane %v31, 0
    %vm35 = vcmask 80896
    %v37 = vsel %vm35, %v28, 0
    %vm39 = vcmask 1041408
    %v41 = vsel %vm39, %v30, 0
    %43 = vmatpush.msra.mxu0 0.0
    %44 = vmatpush.msra.mxu0 0.0
    %45 = vmatpush.msra.mxu0 0.0
    %46 = vmatpush.msra.mxu0 0.0
    %47 = vmatpush.msra.mxu0 0.0
    %48 = vmatpush.msra.mxu0 0.0
    %49 = vmatpush.msra.mxu0 0.0
    %50 = vmatpush.msra.mxu0 0.0
    %51 = vmatpush.msra.mxu0 0.0
    %52 = vmatpush.msra.mxu0 0.0
    %53 = vmatpush.msra.mxu0 0.0
    %54 = vmatpush.msra.mxu0 0.0
    %55 = vmatpush.msra.mxu0 0.0
    %56 = vmatpush.msra.mxu0 0.0
    %57 = vmatpush.msra.mxu0 %v41
    %58 = vmatpush.msra.mxu0 %v29
    %59 = vmatmul.f32.gmra.mxu0 %v37
    %v60 = vpop.f32.mrf.mxu0
    %v61 = vadd.f32 %v33, %v60
    %62 = vdwg.mxu0
    %v63 = vmax.f32 %v61, 0.0
    %v64 = vld [vmem:[%s3] sm:$0xff]
    %v65 = vld [vmem:[%s3 + $0x8] sm:$0xff]
    %v66 = vld [vmem:[%s3 + $0x10] sm:$0xff]
    %v67 = vld [vmem:[%s3 + $0x18] sm:$0xff]
    %v68 = vld [vmem:[%s3 + $0x20] sm:$0xff]
    %v69 = vld [vmem:[%s3 + $0x28] sm:$0xff]
    %v70 = vld [vmem:[%s3 + $0x30] sm:$0xff]
    %v71 = vld [vmem:[%s3 + $0x38] sm:$0xff]
    %v72 = vld [vmem:[%s3 + $0x40] sm:$0xff]
    %v73 = vld [vmem:[%s3 + $0x48] sm:$0xff]
    %v74 = vld [vmem:[%s3 + $0x50] sm:$0xff]
    %v75 = vld [vmem:[%s3 + $0x58] sm:$0xff]
    %v76 = vld [vmem:[%s3 + $0x60] sm:$0xff]
    %v77 = vld [vmem:[%s3 + $0x68] sm:$0xff]
    %v78 = vld [vmem:[%s3 + $0x70] sm:$0xff]
    %v79 = vld [vmem:[%s3 + $0x78] sm:$0xff]
    %v80 = vld [vmem:[%s4] sm:$0x1]
    %v82 = vperm.slane %v80, 0
    %84 = vmatpush.msra.mxu0 %v79
    %85 = vmatpush.msra.mxu0 %v78
    %86 = vmatpush.msra.mxu0 %v77
    %87 = vmatpush.msra.mxu0 %v76
    %88 = vmatpush.msra.mxu0 %v75
    %89 = vmatpush.msra.mxu0 %v74
    %90 = vmatpush.msra.mxu0 %v73
    %91 = vmatpush.msra.mxu0 %v72
    %92 = vmatpush.msra.mxu0 %v71
    %93 = vmatpush.msra.mxu0 %v70
    %94 = vmatpush.msra.mxu0 %v69
    %95 = vmatpush.msra.mxu0 %v68
    %96 = vmatpush.msra.mxu0 %v67
    %97 = vmatpush.msra.mxu0 %v66
    %98 = vmatpush.msra.mxu0 %v65
    %99 = vmatpush.msra.mxu0 %v64
    %100 = vmatmul.f32.gmra.mxu0 %v63
    %v101 = vpop.f32.mrf.mxu0
    %v102 = vadd.f32 %v82, %v101
    %103 = vdwg.mxu0
    %v104 = vmax.f32 %v102, 0.0
    %v105 = vld [vmem:[%s5] sm:$0x1]
    %v107 = vperm.slane %v105, 0
    %v109 = vmul.f32 %v104, %v107
    %vm110 = vcmask 523264
    %v111 = vsel %vm110, %v109, 0.0
    %112 = vadd.xlane.f32.xlu0 %v111
    %v113 = vpop.xlane.xlu0 %112
    %s114 = sld [smem:[#allocation2]]
    %v115 = vstv %s114
    %v116 = vadd.f32 %v113, %v115
    %117 = vst [vmem:[#allocation3] sm:$0xff] %v116
    // Predicated region
    $region30: #{tpu_custom_call.1} parent=1 // pred_check
      _
    $region31: #{tpu_custom_call.1} parent=1 // pred_check_branch
      %119 = sbr.rel (0) target = $region33
    $region32: #{tpu_custom_call.1} parent=1 // pred_region
      %121 = vsyncadd [#allocation4], 0
      %s123 = sshll.u32 [#allocation3], 4
      %s124 = int_to_ptr.vmem [resolvable:$true] %s123
      %s125 = sshll.u32 %s7, 4
      %s126 = int_to_ptr.hbm [resolvable:$true] %s125
      %128 = dma.vmem_to_hbm [thread:$0]  %s124, 128, %s126, [#allocation4]
    $region33: #{tpu_custom_call.1} parent=1 // pred_fallthru
      _
    // Predicated region
    $region34: #{tpu_custom_call.1} parent=1 // pred_check
      _
    $region35: #{tpu_custom_call.1} parent=1 // pred_check_branch
      %130 = sbr.rel (0) target = $region37
    $region36: #{tpu_custom_call.1} parent=1 // pred_region
      %132 = dma.done [#allocation4], 128
    $region37: #{tpu_custom_call.1} parent=1 // pred_fallthru
      _
    %133 = vsyncpa [#allocation4], 1

</llo_original>
